<compile_context>
chip_gen: v7x
topology: tpu7x:2x2x1
jax: 0.10.0
libtpu: 0.0.40
codegen_flags: <defaults>
</compile_context>

<pallas_src>
import jax
import jax.numpy as jnp
from jax.experimental import pallas as pl
from jax.experimental.pallas import tpu as pltpu


# ----------------------------------------------------------------------------
# Kernels
# ----------------------------------------------------------------------------
def _decoder_a_kernel_eval(x_ref, w1_ref, b1_ref, w2_ref, b2_ref, o_ref):
    """Eval mode: Dropout is the identity."""
    w1 = w1_ref[...]                     # already matmul dtype (bf16 by default)
    w2 = w2_ref[...]
    x = x_ref[...]

    # Linear #1 on the MXU, f32 accumulation.
    h = jnp.dot(x.astype(w1.dtype), w1,
                preferred_element_type=jnp.float32) + b1_ref[...]

    # Tanhshrink: x - tanh(x)  (EUP tanh, VPU sub — stays in f32).
    h = h - jnp.tanh(h)

    # Linear #2 on the MXU.
    y = jnp.dot(h.astype(w2.dtype), w2,
                preferred_element_type=jnp.float32) + b2_ref[...]
    o_ref[...] = y.astype(o_ref.dtype)


def _decoder_a_kernel_train(x_ref, w1_ref, b1_ref, w2_ref, b2_ref, mask_ref,
                            o_ref):
    """Train mode: mask_ref holds the pre-scaled keep mask (0 or 1/(1-p))."""
    w1 = w1_ref[...]
    w2 = w2_ref[...]
    x = x_ref[...]

    h = jnp.dot(x.astype(w1.dtype), w1,
                preferred_element_type=jnp.float32) + b1_ref[...]

    # Dropout folded into a single multiply (scale already baked into the mask).
    h = h * mask_ref[...]

    h = h - jnp.tanh(h)

    y = jnp.dot(h.astype(w2.dtype), w2,
                preferred_element_type=jnp.float32) + b2_ref[...]
    o_ref[...] = y.astype(o_ref.dtype)


# ----------------------------------------------------------------------------
# Wrapper
# ----------------------------------------------------------------------------
def _round_up(x, m):
    return ((x + m - 1) // m) * m


def _pad_to(a, shape):
    pads = [(0, s - d) for d, s in zip(a.shape, shape)]
    return jnp.pad(a, pads)


def decoder_a(x, w1_t, b1, w2_t, b2, *, training=False, p=0.5, rng=None,
              matmul_dtype=jnp.bfloat16):
    """x: (B, D); w*_t: (D, D) pre-transposed to (in, out); b*: (D,) or (1, D)."""
    B, D = x.shape

    # Lane-dense / sublane-aligned padding.  Zero padding is semantics-preserving
    # here: padded weight rows/cols and biases are zero, tanhshrink(0)=0, and the
    # padded region is sliced off at the end.
    D_pad = _round_up(D, 128)
    B8 = _round_up(B, 8)
    tm = B8 if B8 <= 256 else 256        # batch tile (rows per grid step)
    B_pad = _round_up(B8, tm)

    xp = _pad_to(x.astype(jnp.float32), (B_pad, D_pad))
    w1p = _pad_to(w1_t.astype(jnp.float32), (D_pad, D_pad)).astype(matmul_dtype)
    w2p = _pad_to(w2_t.astype(jnp.float32), (D_pad, D_pad)).astype(matmul_dtype)
    b1p = _pad_to(jnp.reshape(b1, (1, D)).astype(jnp.float32), (1, D_pad))
    b2p = _pad_to(jnp.reshape(b2, (1, D)).astype(jnp.float32), (1, D_pad))

    grid = (B_pad // tm,)
    row_spec = pl.BlockSpec((tm, D_pad), lambda i: (i, 0))        # per-tile rows
    w_spec = pl.BlockSpec((D_pad, D_pad), lambda i: (0, 0))       # resident weights
    b_spec = pl.BlockSpec((1, D_pad), lambda i: (0, 0))           # resident bias
    # NOTE: at large D the two resident (D_pad, D_pad) weights dominate VMEM
    # (budget 64 MiB on v7x); that regime would need a K-tiled grid with a VMEM
    # f32 accumulator + pl.when init/finalize.  Not needed at these sizes.

    use_dropout = training and p > 0.0
    if use_dropout:
        # TODO(synk): dropout mask uses jax.random, not torch's RNG stream; only
        # the keep distribution matches torch.nn.Dropout, not the bits.
        if rng is None:
            rng = jax.random.PRNGKey(0)
        if p >= 1.0:
            mask = jnp.zeros((B_pad, D_pad), jnp.float32)
        else:
            keep = jax.random.bernoulli(rng, 1.0 - p, (B_pad, D_pad))
            mask = keep.astype(jnp.float32) * jnp.float32(1.0 / (1.0 - p))
        kernel = _decoder_a_kernel_train
        inputs = (xp, w1p, b1p, w2p, b2p, mask)
        in_specs = [row_spec, w_spec, b_spec, w_spec, b_spec, row_spec]
    else:
        kernel = _decoder_a_kernel_eval
        inputs = (xp, w1p, b1p, w2p, b2p)
        in_specs = [row_spec, w_spec, b_spec, w_spec, b_spec]

    out = pl.pallas_call(
        kernel,
        out_shape=jax.ShapeDtypeStruct((B_pad, D_pad), x.dtype),
        grid=grid,
        in_specs=in_specs,
        out_specs=row_spec,
        compiler_params=pltpu.CompilerParams(
            dimension_semantics=("parallel",)),
    )(*inputs)

    return out[:B, :D]


# ----------------------------------------------------------------------------
# Deterministic parameter init (mirrors init_weights: orthogonal W, zero bias)
# ----------------------------------------------------------------------------
def orthogonal_init(key, n, gain=1.0):
    a = jax.random.normal(key, (n, n), dtype=jnp.float32)
    q, r = jnp.linalg.qr(a)
    q = q * jnp.sign(jnp.diag(r))[None, :]
    return gain * q


def make_params(key, num_inputs):
    k1, k2 = jax.random.split(key)
    # PyTorch Linear weight is (out, in); we store its transpose (in, out).
    w1_t = orthogonal_init(k1, num_inputs).T
    w2_t = orthogonal_init(k2, num_inputs).T
    b1 = jnp.zeros((num_inputs,), dtype=jnp.float32)
    b2 = jnp.zeros((num_inputs,), dtype=jnp.float32)
    return w1_t, b1, w2_t, b2


# ----------------------------------------------------------------------------
# Pure-JAX reference (eval mode: dropout = identity), mirrors the kernel's
# matmul-operand dtype so the comparison is apples-to-apples.
# ----------------------------------------------------------------------------
def decoder_a_ref(x, w1_t, b1, w2_t, b2, matmul_dtype=jnp.float32):
    mdt = matmul_dtype
    h = jnp.dot(x.astype(mdt), w1_t.astype(mdt),
                preferred_element_type=jnp.float32) + b1
    h = h - jnp.tanh(h)
    return jnp.dot(h.astype(mdt), w2_t.astype(mdt),
                   preferred_element_type=jnp.float32) + b2


if __name__ == "__main__":
    key = jax.random.PRNGKey(0)
    kx, kp, kd = jax.random.split(key, 3)

    B, D = 8, 32          # batch=8, num_inputs=32
    x = jax.random.normal(kx, (B, D), dtype=jnp.float32)
    w1_t, b1, w2_t, b2 = make_params(kp, D)

    # 1) Exactness check: f32 matmul operands vs pure-f32 reference.
    out_f32 = jax.block_until_ready(
        decoder_a(x, w1_t, b1, w2_t, b2, matmul_dtype=jnp.float32))
    ref_f32 = decoder_a_ref(x, w1_t, b1, w2_t, b2, jnp.float32)
    assert jnp.allclose(out_f32, ref_f32, atol=1e-5, rtol=1e-5), \
        "f32 kernel mismatch vs reference"

    # 2) Default bf16-MXU path vs a reference applying the same operand casts.
    out_bf16 = jax.block_until_ready(decoder_a(x, w1_t, b1, w2_t, b2))
    ref_bf16 = decoder_a_ref(x, w1_t, b1, w2_t, b2, jnp.bfloat16)
    assert jnp.allclose(out_bf16, ref_bf16, atol=2e-3, rtol=2e-3), \
        "bf16 kernel mismatch vs bf16-cast reference"

    # 3) Training-mode path (dropout mask applied in-kernel).
    out_train = jax.block_until_ready(
        decoder_a(x, w1_t, b1, w2_t, b2, training=True, p=0.5, rng=kd))
    assert out_train.shape == (B, D)
    assert bool(jnp.all(jnp.isfinite(out_train)))

    print("KERNEL_OK")
</pallas_src>

<mosaic_0001>
module attributes {stable_mosaic.version = 11 : i64} {
  func.func @_decoder_a_kernel_eval(%arg0: i32, %arg1: memref<8x128xf32, #tpu.memory_space<vmem>>, %arg2: memref<128x128xf32, #tpu.memory_space<vmem>>, %arg3: memref<1x128xf32, #tpu.memory_space<vmem>>, %arg4: memref<128x128xf32, #tpu.memory_space<vmem>>, %arg5: memref<1x128xf32, #tpu.memory_space<vmem>>, %arg6: memref<8x128xf32, #tpu.memory_space<vmem>>) attributes {dimension_semantics = [#tpu.dimension_semantics<parallel>], iteration_bounds = array<i64: 1>, scalar_prefetch = 0 : i64, scratch_operands = 0 : i64, tpu.core_type = #tpu.core_type<tc>, window_params = [{transform_indices = @transform_0, window_bounds = array<i64: 8, 128>}, {pipeline_mode = #tpu.pipeline_mode<synchronous>, transform_indices = @transform_1, window_bounds = array<i64: 128, 128>}, {pipeline_mode = #tpu.pipeline_mode<synchronous>, transform_indices = @transform_2, window_bounds = array<i64: 1, 128>}, {pipeline_mode = #tpu.pipeline_mode<synchronous>, transform_indices = @transform_3, window_bounds = array<i64: 128, 128>}, {pipeline_mode = #tpu.pipeline_mode<synchronous>, transform_indices = @transform_4, window_bounds = array<i64: 1, 128>}, {transform_indices = @transform_5, window_bounds = array<i64: 8, 128>}]} {
    %c0 = arith.constant 0 : index
    %c0_0 = arith.constant 0 : index
    %0 = vector.load %arg2[%c0, %c0_0] : memref<128x128xf32, #tpu.memory_space<vmem>>, vector<128x128xf32>
    %c0_1 = arith.constant 0 : index
    %c0_2 = arith.constant 0 : index
    %1 = vector.load %arg4[%c0_1, %c0_2] : memref<128x128xf32, #tpu.memory_space<vmem>>, vector<128x128xf32>
    %c0_3 = arith.constant 0 : index
    %c0_4 = arith.constant 0 : index
    %2 = vector.load %arg1[%c0_3, %c0_4] : memref<8x128xf32, #tpu.memory_space<vmem>>, vector<8x128xf32>
    %cst = arith.constant dense<0.000000e+00> : vector<8x128xf32>
    %3 = tpu.matmul %2, %0, %cst {dimension_numbers = #tpu.dot_dimension_numbers<[1], [0], [0], [1], [0, 0, 1, 1], [], []>} : vector<8x128xf32>, vector<128x128xf32>, vector<8x128xf32> -> vector<8x128xf32>
    %c0_5 = arith.constant 0 : index
    %c0_6 = arith.constant 0 : index
    %4 = vector.load %arg3[%c0_5, %c0_6] : memref<1x128xf32, #tpu.memory_space<vmem>>, vector<1x128xf32>
    %5 = vector.broadcast %4 : vector<1x128xf32> to vector<8x128xf32>
    %6 = arith.addf %3, %5 : vector<8x128xf32>
    %7 = math.tanh %6 : vector<8x128xf32>
    %8 = arith.subf %6, %7 : vector<8x128xf32>
    %cst_7 = arith.constant dense<0.000000e+00> : vector<8x128xf32>
    %9 = tpu.matmul %8, %1, %cst_7 {dimension_numbers = #tpu.dot_dimension_numbers<[1], [0], [0], [1], [0, 0, 1, 1], [], []>} : vector<8x128xf32>, vector<128x128xf32>, vector<8x128xf32> -> vector<8x128xf32>
    %c0_8 = arith.constant 0 : index
    %c0_9 = arith.constant 0 : index
    %10 = vector.load %arg5[%c0_8, %c0_9] : memref<1x128xf32, #tpu.memory_space<vmem>>, vector<1x128xf32>
    %11 = vector.broadcast %10 : vector<1x128xf32> to vector<8x128xf32>
    %12 = arith.addf %9, %11 : vector<8x128xf32>
    %c0_10 = arith.constant 0 : index
    %c0_11 = arith.constant 0 : index
    %13 = vector.load %arg6[%c0_10, %c0_11] : memref<8x128xf32, #tpu.memory_space<vmem>>, vector<8x128xf32>
    tpu.vector_store %arg6[%c0_10, %c0_11], %12 {strides = array<i32>} : memref<8x128xf32, #tpu.memory_space<vmem>>, vector<8x128xf32>,
    return
  }
  func.func @transform_0(%arg0: i32) -> (i32, i32) {
    %c0_i32 = arith.constant 0 : i32
    %c0_i32_0 = arith.constant 0 : i32
    return %arg0, %c0_i32 : i32, i32
  }
  func.func @transform_1(%arg0: i32) -> (i32, i32) {
    %c0_i32 = arith.constant 0 : i32
    %c0_i32_0 = arith.constant 0 : i32
    %c0_i32_1 = arith.constant 0 : i32
    return %c0_i32, %c0_i32_0 : i32, i32
  }
  func.func @transform_2(%arg0: i32) -> (i32, i32) {
    %c0_i32 = arith.constant 0 : i32
    %c0_i32_0 = arith.constant 0 : i32
    %c0_i32_1 = arith.constant 0 : i32
    return %c0_i32, %c0_i32_0 : i32, i32
  }
  func.func @transform_3(%arg0: i32) -> (i32, i32) {
    %c0_i32 = arith.constant 0 : i32
    %c0_i32_0 = arith.constant 0 : i32
    %c0_i32_1 = arith.constant 0 : i32
    return %c0_i32, %c0_i32_0 : i32, i32
  }
  func.func @transform_4(%arg0: i32) -> (i32, i32) {
    %c0_i32 = arith.constant 0 : i32
    %c0_i32_0 = arith.constant 0 : i32
    %c0_i32_1 = arith.constant 0 : i32
    return %c0_i32, %c0_i32_0 : i32, i32
  }
  func.func @transform_5(%arg0: i32) -> (i32, i32) {
    %c0_i32 = arith.constant 0 : i32
    %c0_i32_0 = arith.constant 0 : i32
    return %arg0, %c0_i32 : i32, i32
  }
}

</mosaic_0001>

<llo_original>
// kernel: tpu_custom_call.1
$region0: #{tpu_custom_call.1}
  #allocation0 [shape = 'u32[]', space=smem, size = 0x4, offset = 0x4, fixed_abs, tag = 'smem constant byte address 0x4 - core index']
  #allocation1 [shape = 'u32[144,128]{1,0:T(1,128)}', space=vmem, size = 0x12000, scoped, tag = 'internal scratch']
  %s0 = inlined_call_operand.hbm [shape: f32[8,128], index: 0, kind: input, shape index: {}]
  %s1 = inlined_call_operand.hbm [shape: f32[128,128], index: 1, kind: input, shape index: {}]
  %s2 = inlined_call_operand.vmem [shape: f32[1,128], index: 2, kind: input, shape index: {}]
  %s3 = inlined_call_operand.hbm [shape: f32[128,128], index: 3, kind: input, shape index: {}]
  %s4 = inlined_call_operand.vmem [shape: f32[1,128], index: 4, kind: input, shape index: {}]
  %s5 = inlined_call_operand.hbm [shape: f32[8,128], index: 5, kind: output, shape index: {}]
  %s6 = sld [smem:[#allocation0]]
  $region42: #{tpu_custom_call.1} parent=0
    _
  %s8 = ssub.s32 1, %s6
  %s9 = scalar_select 0, %s8, %s6
  $region1: #{tpu_custom_call.1} parent=0
    #allocation2 [shape = 'u8[4096]{0}', space=vmem, size = 0x1000, scoped, tag = 'input window, operand 0, single buffered']
    #allocation3 [shape = 's32[1]{0}', space=sflag, size = 0x4, scoped, tag = 'scoped memory for tpu_custom_call.1']
    #allocation4 [shape = 's32[1]{0}', space=sflag, size = 0x4, scoped, tag = 'scoped memory for tpu_custom_call.1']
    #allocation5 [shape = 'u8[65536]{0}', space=vmem, size = 0x10000, scoped, tag = 'input window, operand 1, single buffered']
    #allocation6 [shape = 's32[1]{0}', space=sflag, size = 0x4, scoped, tag = 'scoped memory for tpu_custom_call.1']
    #allocation7 [shape = 'u8[65536]{0}', space=vmem, size = 0x10000, scoped, tag = 'input window, operand 3, single buffered']
    #allocation8 [shape = 'u8[4096]{0}', space=vmem, size = 0x1000, scoped, tag = 'output window, operand 0, single buffered']
    %10 = vsyncpa [#allocation3], 0
    %11 = vsyncpa [#allocation6], 0
    %12 = vsyncpa [#allocation4], 0
    // Predicated region
    $region2: #{tpu_custom_call.1} parent=1 // pred_check
      _
    $region3: #{tpu_custom_call.1} parent=1 // pred_check_branch
      %14 = sbr.rel (0) target = $region5
    $region4: #{tpu_custom_call.1} parent=1 // pred_region
      %s16 = ssub.s32 128, 128
      %17 = vsyncadd [#allocation3], %s16
      %s19 = sshll.u32 [#allocation2], 4
      %s20 = int_to_ptr.vmem [resolvable:$true] %s19
      %22 = dma.hbm_to_vmem [thread:$0]  %s0, 128, %s20, [#allocation3]
    $region5: #{tpu_custom_call.1} parent=1 // pred_fallthru
      _
    // Predicated region
    $region6: #{tpu_custom_call.1} parent=1 // pred_check
      _
    $region7: #{tpu_custom_call.1} parent=1 // pred_check_branch
      %24 = sbr.rel (0) target = $region9
    $region8: #{tpu_custom_call.1} parent=1 // pred_region
      %s26 = ssub.s32 2048, 2048
      %27 = vsyncadd [#allocation6], %s26
      %s28 = sshll.u32 [#allocation5], 4
      %s29 = int_to_ptr.vmem [resolvable:$true] %s28
      %34 = dma.hbm_to_vmem [thread:$0]  %s1, 2048, %s29, [#allocation6], 128, 128, 8
    $region9: #{tpu_custom_call.1} parent=1 // pred_fallthru
      _
    // Predicated region
    $region10: #{tpu_custom_call.1} parent=1 // pred_check
      _
    $region11: #{tpu_custom_call.1} parent=1 // pred_check_branch
      %36 = sbr.rel (0) target = $region13
    $region12: #{tpu_custom_call.1} parent=1 // pred_region
      _
    $region13: #{tpu_custom_call.1} parent=1 // pred_fallthru
      _
    // Predicated region
    $region14: #{tpu_custom_call.1} parent=1 // pred_check
      _
    $region15: #{tpu_custom_call.1} parent=1 // pred_check_branch
      %38 = sbr.rel (0) target = $region17
    $region16: #{tpu_custom_call.1} parent=1 // pred_region
      %s40 = ssub.s32 2048, 2048
      %41 = vsyncadd [#allocation6], %s40
      %s42 = sshll.u32 [#allocation7], 4
      %s43 = int_to_ptr.vmem [resolvable:$true] %s42
      %48 = dma.hbm_to_vmem [thread:$0]  %s3, 2048, %s43, [#allocation6], 128, 128, 8
    $region17: #{tpu_custom_call.1} parent=1 // pred_fallthru
      _
    // Predicated region
    $region18: #{tpu_custom_call.1} parent=1 // pred_check
      _
    $region19: #{tpu_custom_call.1} parent=1 // pred_check_branch
      %50 = sbr.rel (0) target = $region21
    $region20: #{tpu_custom_call.1} parent=1 // pred_region
      _
    $region21: #{tpu_custom_call.1} parent=1 // pred_fallthru
      _
    // Predicated region
    $region22: #{tpu_custom_call.1} parent=1 // pred_check
      _
    $region23: #{tpu_custom_call.1} parent=1 // pred_check_branch
      %52 = sbr.rel (0) target = $region25
    $region24: #{tpu_custom_call.1} parent=1 // pred_region
      %53 = dma.done [#allocation3], 128
    $region25: #{tpu_custom_call.1} parent=1 // pred_fallthru
      _
    // Predicated region
    $region26: #{tpu_custom_call.1} parent=1 // pred_check
      _
    $region27: #{tpu_custom_call.1} parent=1 // pred_check_branch
      %55 = sbr.rel (0) target = $region29
    $region28: #{tpu_custom_call.1} parent=1 // pred_region
      %56 = dma.done [#allocation6], 2048
    $region29: #{tpu_custom_call.1} parent=1 // pred_fallthru
      _
    // Predicated region
    $region30: #{tpu_custom_call.1} parent=1 // pred_check
      _
    $region31: #{tpu_custom_call.1} parent=1 // pred_check_branch
      %58 = sbr.rel (0) target = $region33
    $region32: #{tpu_custom_call.1} parent=1 // pred_region
      %59 = dma.done [#allocation6], 2048
    $region33: #{tpu_custom_call.1} parent=1 // pred_fallthru
      _
    %v60 = vld [vmem:[#allocation5] sm:$0xff]
    %v61 = vld [vmem:[#allocation5 + $0x8] sm:$0xff]
    %v62 = vld [vmem:[#allocation5 + $0x10] sm:$0xff]
    %v63 = vld [vmem:[#allocation5 + $0x18] sm:$0xff]
    %v64 = vld [vmem:[#allocation5 + $0x20] sm:$0xff]
    %v65 = vld [vmem:[#allocation5 + $0x28] sm:$0xff]
    %v66 = vld [vmem:[#allocation5 + $0x30] sm:$0xff]
    %v67 = vld [vmem:[#allocation5 + $0x38] sm:$0xff]
    %v68 = vld [vmem:[#allocation5 + $0x40] sm:$0xff]
    %v69 = vld [vmem:[#allocation5 + $0x48] sm:$0xff]
    %v70 = vld [vmem:[#allocation5 + $0x50] sm:$0xff]
    %v71 = vld [vmem:[#allocation5 + $0x58] sm:$0xff]
    %v72 = vld [vmem:[#allocation5 + $0x60] sm:$0xff]
    %v73 = vld [vmem:[#allocation5 + $0x68] sm:$0xff]
    %v74 = vld [vmem:[#allocation5 + $0x70] sm:$0xff]
    %v75 = vld [vmem:[#allocation5 + $0x78] sm:$0xff]
    %v76 = vld [vmem:[#allocation7] sm:$0xff]
    %v77 = vld [vmem:[#allocation7 + $0x8] sm:$0xff]
    %v78 = vld [vmem:[#allocation7 + $0x10] sm:$0xff]
    %v79 = vld [vmem:[#allocation7 + $0x18] sm:$0xff]
    %v80 = vld [vmem:[#allocation7 + $0x20] sm:$0xff]
    %v81 = vld [vmem:[#allocation7 + $0x28] sm:$0xff]
    %v82 = vld [vmem:[#allocation7 + $0x30] sm:$0xff]
    %v83 = vld [vmem:[#allocation7 + $0x38] sm:$0xff]
    %v84 = vld [vmem:[#allocation7 + $0x40] sm:$0xff]
    %v85 = vld [vmem:[#allocation7 + $0x48] sm:$0xff]
    %v86 = vld [vmem:[#allocation7 + $0x50] sm:$0xff]
    %v87 = vld [vmem:[#allocation7 + $0x58] sm:$0xff]
    %v88 = vld [vmem:[#allocation7 + $0x60] sm:$0xff]
    %v89 = vld [vmem:[#allocation7 + $0x68] sm:$0xff]
    %v90 = vld [vmem:[#allocation7 + $0x70] sm:$0xff]
    %v91 = vld [vmem:[#allocation7 + $0x78] sm:$0xff]
    %v92 = vld [vmem:[#allocation2] sm:$0xff]
    %v93 = vld [vmem:[%s2] sm:$0x1]
    %v95 = vlaneseq
    %v96 = vshrl.u32 %v95, 7
    %v97 = vsub.s32 0, %v96
    %v98 = vrot.slane %v93, %v97
    %100 = vmatprep.subr.mxu0 0.0
    %101 = vmatpush1.msra.mxu0 %v60
    %102 = vmatprep.subr.mxu0 0.0
    %103 = vmatpush1.msra.mxu0 %v61
    %104 = vmatprep.subr.mxu0 0.0
    %105 = vmatpush1.msra.mxu0 %v62
    %106 = vmatprep.subr.mxu0 0.0
    %107 = vmatpush1.msra.mxu0 %v63
    %108 = vmatprep.subr.mxu0 0.0
    %109 = vmatpush1.msra.mxu0 %v64
    %110 = vmatprep.subr.mxu0 0.0
    %111 = vmatpush1.msra.mxu0 %v65
    %112 = vmatprep.subr.mxu0 0.0
    %113 = vmatpush1.msra.mxu0 %v66
    %114 = vmatprep.subr.mxu0 0.0
    %115 = vmatpush1.msra.mxu0 %v67
    %116 = vmatprep.subr.mxu0 0.0
    %117 = vmatpush1.msra.mxu0 %v68
    %118 = vmatprep.subr.mxu0 0.0
    %119 = vmatpush1.msra.mxu0 %v69
    %120 = vmatprep.subr.mxu0 0.0
    %121 = vmatpush1.msra.mxu0 %v70
    %122 = vmatprep.subr.mxu0 0.0
    %123 = vmatpush1.msra.mxu0 %v71
    %124 = vmatprep.subr.mxu0 0.0
    %125 = vmatpush1.msra.mxu0 %v72
    %126 = vmatprep.subr.mxu0 0.0
    %127 = vmatpush1.msra.mxu0 %v73
    %128 = vmatprep.subr.mxu0 0.0
    %129 = vmatpush1.msra.mxu0 %v74
    %130 = vmatprep.subr.mxu0 0.0
    %131 = vmatpush1.msra.mxu0 %v75
    %132 = vmatprep.subr.mxu0 0.0
    %133 = vmatpush1.msra.mxu0 0.0
    %134 = vmatprep.subr.mxu0 0.0
    %135 = vmatpush1.msra.mxu0 0.0
    %136 = vmatprep.subr.mxu0 0.0
    %137 = vmatpush1.msra.mxu0 0.0
    %138 = vmatprep.subr.mxu0 0.0
    %139 = vmatpush1.msra.mxu0 0.0
    %140 = vmatprep.subr.mxu0 0.0
    %141 = vmatpush1.msra.mxu0 0.0
    %142 = vmatprep.subr.mxu0 0.0
    %143 = vmatpush1.msra.mxu0 0.0
    %144 = vmatprep.subr.mxu0 0.0
    %145 = vmatpush1.msra.mxu0 0.0
    %146 = vmatprep.subr.mxu0 0.0
    %147 = vmatpush1.msra.mxu0 0.0
    %148 = vmatprep.subr.mxu0 0.0
    %149 = vmatpush1.msra.mxu0 0.0
    %150 = vmatprep.subr.mxu0 0.0
    %151 = vmatpush1.msra.mxu0 0.0
    %152 = vmatprep.subr.mxu0 0.0
    %153 = vmatpush1.msra.mxu0 0.0
    %154 = vmatprep.subr.mxu0 0.0
    %155 = vmatpush1.msra.mxu0 0.0
    %156 = vmatprep.subr.mxu0 0.0
    %157 = vmatpush1.msra.mxu0 0.0
    %158 = vmatprep.subr.mxu0 0.0
    %159 = vmatpush1.msra.mxu0 0.0
    %160 = vmatprep.subr.mxu0 0.0
    %161 = vmatpush1.msra.mxu0 0.0
    %162 = vmatprep.subr.mxu0 0.0
    %163 = vmatpush1.msra.mxu0 0.0
    %164 = vmatprep.mubr.f32.mxu0 0.0
    %165 = vmatmul.mubr.f32.gmra.mrb[0].mxu0 %v92
    %v166 = vpop.f32.mrb[0].mxu0
    %v167 = vadd.f32 %v98, %v166
    %v168 = vpop.f32.mrb[0].mxu0
    %169 = vdwg.mxu0
    %v170 = vtanh.pop %v167
    %v171 = vsub.f32 %v167, %v170
    %v172 = vld [vmem:[%s4] sm:$0x1]
    %v174 = vlaneseq
    %v175 = vshrl.u32 %v174, 7
    %v176 = vsub.s32 0, %v175
    %v177 = vrot.slane %v172, %v176
    %179 = vmatprep.subr.mxu0 0.0
    %180 = vmatpush1.msra.mxu0 %v76
    %181 = vmatprep.subr.mxu0 0.0
    %182 = vmatpush1.msra.mxu0 %v77
    %183 = vmatprep.subr.mxu0 0.0
    %184 = vmatpush1.msra.mxu0 %v78
    %185 = vmatprep.subr.mxu0 0.0
    %186 = vmatpush1.msra.mxu0 %v79
    %187 = vmatprep.subr.mxu0 0.0
    %188 = vmatpush1.msra.mxu0 %v80
    %189 = vmatprep.subr.mxu0 0.0
    %190 = vmatpush1.msra.mxu0 %v81
    %191 = vmatprep.subr.mxu0 0.0
    %192 = vmatpush1.msra.mxu0 %v82
    %193 = vmatprep.subr.mxu0 0.0
    %194 = vmatpush1.msra.mxu0 %v83
    %195 = vmatprep.subr.mxu0 0.0
    %196 = vmatpush1.msra.mxu0 %v84
    %197 = vmatprep.subr.mxu0 0.0
    %198 = vmatpush1.msra.mxu0 %v85
    %199 = vmatprep.subr.mxu0 0.0
    %200 = vmatpush1.msra.mxu0 %v86
    %201 = vmatprep.subr.mxu0 0.0
    %202 = vmatpush1.msra.mxu0 %v87
    %203 = vmatprep.subr.mxu0 0.0
    %204 = vmatpush1.msra.mxu0 %v88
    %205 = vmatprep.subr.mxu0 0.0
    %206 = vmatpush1.msra.mxu0 %v89
    %207 = vmatprep.subr.mxu0 0.0
    %208 = vmatpush1.msra.mxu0 %v90
    %209 = vmatprep.subr.mxu0 0.0
    %210 = vmatpush1.msra.mxu0 %v91
    %211 = vmatprep.subr.mxu0 0.0
    %212 = vmatpush1.msra.mxu0 0.0
    %213 = vmatprep.subr.mxu0 0.0
    %214 = vmatpush1.msra.mxu0 0.0
    %215 = vmatprep.subr.mxu0 0.0
    %216 = vmatpush1.msra.mxu0 0.0
    %217 = vmatprep.subr.mxu0 0.0
    %218 = vmatpush1.msra.mxu0 0.0
    %219 = vmatprep.subr.mxu0 0.0
    %220 = vmatpush1.msra.mxu0 0.0
    %221 = vmatprep.subr.mxu0 0.0
    %222 = vmatpush1.msra.mxu0 0.0
    %223 = vmatprep.subr.mxu0 0.0
    %224 = vmatpush1.msra.mxu0 0.0
    %225 = vmatprep.subr.mxu0 0.0
    %226 = vmatpush1.msra.mxu0 0.0
    %227 = vmatprep.subr.mxu0 0.0
    %228 = vmatpush1.msra.mxu0 0.0
    %229 = vmatprep.subr.mxu0 0.0
    %230 = vmatpush1.msra.mxu0 0.0
    %231 = vmatprep.subr.mxu0 0.0
    %232 = vmatpush1.msra.mxu0 0.0
    %233 = vmatprep.subr.mxu0 0.0
    %234 = vmatpush1.msra.mxu0 0.0
    %235 = vmatprep.subr.mxu0 0.0
    %236 = vmatpush1.msra.mxu0 0.0
    %237 = vmatprep.subr.mxu0 0.0
    %238 = vmatpush1.msra.mxu0 0.0
    %239 = vmatprep.subr.mxu0 0.0
    %240 = vmatpush1.msra.mxu0 0.0
    %241 = vmatprep.subr.mxu0 0.0
    %242 = vmatpush1.msra.mxu0 0.0
    %243 = vmatprep.mubr.f32.mxu0 0.0
    %244 = vmatmul.mubr.f32.gmra.mrb[0].mxu0 %v171
    %v245 = vpop.f32.mrb[0].mxu0
    %v246 = vadd.f32 %v177, %v245
    %v247 = vpop.f32.mrb[0].mxu0
    %248 = vdwg.mxu0
    %249 = vst [vmem:[#allocation8] sm:$0xff] %v246
    // Predicated region
    $region34: #{tpu_custom_call.1} parent=1 // pred_check
      _
    $region35: #{tpu_custom_call.1} parent=1 // pred_check_branch
      %251 = sbr.rel (0) target = $region37
    $region36: #{tpu_custom_call.1} parent=1 // pred_region
      %s253 = ssub.s32 128, 128
      %254 = vsyncadd [#allocation4], %s253
      %s256 = sshll.u32 [#allocation8], 4
      %s257 = int_to_ptr.vmem [resolvable:$true] %s256
      %259 = dma.vmem_to_hbm [thread:$0]  %s257, 128, %s5, [#allocation4]
    $region37: #{tpu_custom_call.1} parent=1 // pred_fallthru
      _
    // Predicated region
    $region38: #{tpu_custom_call.1} parent=1 // pred_check
      _
    $region39: #{tpu_custom_call.1} parent=1 // pred_check_branch
      %261 = sbr.rel (0) target = $region41
    $region40: #{tpu_custom_call.1} parent=1 // pred_region
      %262 = dma.done [#allocation4], 128
    $region41: #{tpu_custom_call.1} parent=1 // pred_fallthru
      _
    %263 = vsyncpa [#allocation3], 1
    %264 = vsyncpa [#allocation6], 1
    %265 = vsyncpa [#allocation4], 1

</llo_original>
